<compile_context>
chip_gen: v7x
topology: tpu7x:2x2x1
jax: 0.10.0
libtpu: 0.0.40
codegen_flags: <defaults>
</compile_context>

<pallas_src>
import jax
import jax.numpy as jnp
from jax.experimental import pallas as pl
from jax.experimental.pallas import tpu as pltpu

SMOOTH = 1.0
LANES = 128
FB_TILE_ROWS = 1024                      # fallback tile: 1024x128 f32 = 512 KiB
PLANE_BUDGET = 2 * 1024 * 1024           # max bytes per input block (per buffer)
VMEM_LIMIT = 32 * 1024 * 1024            # explicit scoped-VMEM limit (safe on all gens)


def _dice_plane_kernel(p_ref, t_ref, out_ref, acc_ref):
    # p_ref / t_ref: (TB, H, W) channel-0 blocks in their native dtype.
    # acc_ref: VMEM (3, H, W) f32 resident partial sums:
    #   acc[0] = sum(p*t), acc[1] = sum(p), acc[2] = sum(t)  (lane/sublane-wise)
    # out_ref: SMEM (3,) f32, written once at the last grid step.
    @pl.when(pl.program_id(0) == 0)
    def _():
        acc_ref[...] = jnp.zeros_like(acc_ref)

    p = p_ref[...].astype(jnp.float32)
    t = t_ref[...].astype(jnp.float32)
    # Pure VPU adds in the hot loop; full cross-lane reduce deferred to the end.
    acc_ref[0] += jnp.sum(p * t, axis=0)
    acc_ref[1] += jnp.sum(p, axis=0)
    acc_ref[2] += jnp.sum(t, axis=0)

    @pl.when(pl.program_id(0) == pl.num_programs(0) - 1)
    def _():
        out_ref[0] = jnp.sum(acc_ref[0])
        out_ref[1] = jnp.sum(acc_ref[1])
        out_ref[2] = jnp.sum(acc_ref[2])


def _dice_rows_kernel(p_ref, t_ref, out_ref, acc_ref):
    # Fallback path: p_ref / t_ref are (FB_TILE_ROWS, 128) row tiles of the
    # flattened (zero-padded) channel-0 data. acc_ref: VMEM (3, 8, 128) f32.
    @pl.when(pl.program_id(0) == 0)
    def _():
        acc_ref[...] = jnp.zeros_like(acc_ref)

    p = p_ref[...].astype(jnp.float32)
    t = t_ref[...].astype(jnp.float32)
    r = p.shape[0]
    acc_ref[0] += jnp.sum((p * t).reshape(r // 8, 8, LANES), axis=0)
    acc_ref[1] += jnp.sum(p.reshape(r // 8, 8, LANES), axis=0)
    acc_ref[2] += jnp.sum(t.reshape(r // 8, 8, LANES), axis=0)

    @pl.when(pl.program_id(0) == pl.num_programs(0) - 1)
    def _():
        out_ref[0] = jnp.sum(acc_ref[0])
        out_ref[1] = jnp.sum(acc_ref[1])
        out_ref[2] = jnp.sum(acc_ref[2])


def _narrow(x):
    # Keep the streamed dtype as narrow as possible (bool masks -> int8).
    return x.astype(jnp.int8) if x.dtype == jnp.bool_ else x


def _pick_batch_block(n, plane_bytes):
    # Largest divisor of n such that a (tb, H, W) block stays under budget.
    max_tb = max(1, PLANE_BUDGET // max(plane_bytes, 1))
    tb = 1
    for d in range(1, min(n, max_tb) + 1):
        if n % d == 0:
            tb = d
    return tb


def dice_loss(y_pred, y_true, smooth=SMOOTH):
    """Equivalent of DiceLoss.forward(y_pred, y_true) for NCHW tensors."""
    assert y_pred.shape == y_true.shape
    assert y_pred.ndim == 4
    N, C, H, W = y_pred.shape

    y_pred = _narrow(y_pred)
    y_true = _narrow(y_true)

    compiler_params = pltpu.CompilerParams(
        dimension_semantics=("arbitrary",),
        vmem_limit_bytes=VMEM_LIMIT,
    )

    plane_f32_bytes = H * W * 4
    if plane_f32_bytes <= PLANE_BUDGET:
        # Main path: no intermediate copy. Channel 0 is selected by the
        # index_map; blocks cover full (H, W) planes so the (8,128) rule is
        # trivially satisfied for any H, W.
        itemsize = max(y_pred.dtype.itemsize, y_true.dtype.itemsize)
        tb = _pick_batch_block(N, H * W * itemsize)
        spec = pl.BlockSpec((tb, pl.Squeezed(), H, W), lambda b: (b, 0, 0, 0))
        sums = pl.pallas_call(
            _dice_plane_kernel,
            out_shape=jax.ShapeDtypeStruct((3,), jnp.float32),
            grid=(N // tb,),
            in_specs=[spec, spec],
            out_specs=pl.BlockSpec(memory_space=pltpu.SMEM),
            scratch_shapes=[pltpu.VMEM((3, H, W), jnp.float32)],
            compiler_params=compiler_params,
        )(y_pred, y_true)
    else:
        # Fallback for very large channel-0 planes: flatten + zero-pad
        # (sum-neutral) and stream large (1024, 128) row tiles.
        p = y_pred[:, 0].reshape(-1)
        t = y_true[:, 0].reshape(-1)
        n = p.shape[0]
        tile = FB_TILE_ROWS * LANES
        n_pad = pl.cdiv(n, tile) * tile
        p = jnp.pad(p, (0, n_pad - n)).reshape(-1, LANES)
        t = jnp.pad(t, (0, n_pad - n)).reshape(-1, LANES)
        rows = p.shape[0]
        spec = pl.BlockSpec((FB_TILE_ROWS, LANES), lambda i: (i, 0))
        sums = pl.pallas_call(
            _dice_rows_kernel,
            out_shape=jax.ShapeDtypeStruct((3,), jnp.float32),
            grid=(rows // FB_TILE_ROWS,),
            in_specs=[spec, spec],
            out_specs=pl.BlockSpec(memory_space=pltpu.SMEM),
            scratch_shapes=[pltpu.VMEM((3, 8, LANES), jnp.float32)],
            compiler_params=compiler_params,
        )(p, t)

    intersection = sums[0]
    p_sum = sums[1]
    t_sum = sums[2]
    dsc = (2.0 * intersection + smooth) / (p_sum + t_sum + smooth)
    return 1.0 - dsc


def _dice_loss_ref(y_pred, y_true, smooth=SMOOTH):
    p = y_pred[:, 0].reshape(-1).astype(jnp.float32)
    t = y_true[:, 0].reshape(-1).astype(jnp.float32)
    inter = jnp.sum(p * t)
    dsc = (2.0 * inter + smooth) / (jnp.sum(p) + jnp.sum(t) + smooth)
    return 1.0 - dsc


if __name__ == "__main__":
    key = jax.random.PRNGKey(0)
    k1, k2 = jax.random.split(key)

    # Small NCHW example: batch=2, channels=4, spatial=16x16.
    y_pred = jax.nn.sigmoid(jax.random.normal(k1, (2, 4, 16, 16), jnp.float32))
    y_true = (jax.random.uniform(k2, (2, 4, 16, 16)) > 0.5).astype(jnp.float32)

    loss = jax.block_until_ready(dice_loss(y_pred, y_true))
    ref = jax.block_until_ready(_dice_loss_ref(y_pred, y_true))
    assert jnp.allclose(loss, ref, atol=1e-5, rtol=1e-5), (loss, ref)

    print("KERNEL_OK")
</pallas_src>

<mosaic_0001>
module attributes {stable_mosaic.version = 11 : i64} {
  func.func @_dice_plane_kernel(%arg0: i32, %arg1: memref<2x1x16x16xf32, #tpu.memory_space<vmem>>, %arg2: memref<2x1x16x16xf32, #tpu.memory_space<vmem>>, %arg3: memref<3xf32, #tpu.memory_space<smem>>, %arg4: memref<3x16x16xf32, #tpu.memory_space<vmem>>) attributes {dimension_semantics = [#tpu.dimension_semantics<arbitrary>], iteration_bounds = array<i64: 1>, scalar_prefetch = 0 : i64, scratch_operands = 1 : i64, tpu.core_type = #tpu.core_type<tc>, window_params = [{transform_indices = @transform_0, window_bounds = array<i64: 2, 1, 16, 16>}, {transform_indices = @transform_1, window_bounds = array<i64: 2, 1, 16, 16>}, {transform_indices = @transform_2, window_bounds = array<i64: 3>}]} {
    %c0_i32 = arith.constant 0 : i32
    %0 = arith.cmpi eq, %arg0, %c0_i32 : i32
    %1 = arith.extui %0 : i1 to i32
    %c0_i32_0 = arith.constant 0 : i32
    %2 = arith.cmpi ne, %1, %c0_i32_0 : i32
    scf.if %2 {
      %cst_28 = arith.constant 0.000000e+00 : f32
      %32 = vector.broadcast %cst_28 : f32 to vector<3x16x16xf32>
      %c0_29 = arith.constant 0 : index
      %c0_30 = arith.constant 0 : index
      %c0_31 = arith.constant 0 : index
      %33 = vector.load %arg4[%c0_29, %c0_30, %c0_31] : memref<3x16x16xf32, #tpu.memory_space<vmem>>, vector<3x16x16xf32>
      tpu.vector_store %arg4[%c0_29, %c0_30, %c0_31], %32 {strides = array<i32>} : memref<3x16x16xf32, #tpu.memory_space<vmem>>, vector<3x16x16xf32>,
    } else {
    }
    %c0 = arith.constant 0 : index
    %c0_1 = arith.constant 0 : index
    %c0_2 = arith.constant 0 : index
    %c0_3 = arith.constant 0 : index
    %3 = vector.load %arg1[%c0, %c0_1, %c0_2, %c0_3] : memref<2x1x16x16xf32, #tpu.memory_space<vmem>>, vector<2x1x16x16xf32>
    %4 = vector.shape_cast %3 : vector<2x1x16x16xf32> to vector<2x16x16xf32>
    %c0_4 = arith.constant 0 : index
    %c0_5 = arith.constant 0 : index
    %c0_6 = arith.constant 0 : index
    %c0_7 = arith.constant 0 : index
    %5 = vector.load %arg2[%c0_4, %c0_5, %c0_6, %c0_7] : memref<2x1x16x16xf32, #tpu.memory_space<vmem>>, vector<2x1x16x16xf32>
    %6 = vector.shape_cast %5 : vector<2x1x16x16xf32> to vector<2x16x16xf32>
    %c0_8 = arith.constant 0 : index
    %c0_9 = arith.constant 0 : index
    %c0_10 = arith.constant 0 : index
    %7 = vector.load %arg4[%c0_8, %c0_9, %c0_10] : memref<3x16x16xf32, #tpu.memory_space<vmem>>, vector<1x16x16xf32>
    %8 = vector.shape_cast %7 : vector<1x16x16xf32> to vector<16x16xf32>
    %9 = arith.mulf %4, %6 : vector<2x16x16xf32>
    %cst = arith.constant dense<0.000000e+00> : vector<16x16xf32>
    %10 = vector.multi_reduction <add>, %9, %cst [0] : vector<2x16x16xf32> to vector<16x16xf32>
    %11 = arith.addf %8, %10 : vector<16x16xf32>
    %c0_11 = arith.constant 0 : index
    %c0_12 = arith.constant 0 : index
    %c0_13 = arith.constant 0 : index
    %12 = vector.load %arg4[%c0_11, %c0_12, %c0_13] : memref<3x16x16xf32, #tpu.memory_space<vmem>>, vector<1x16x16xf32>
    %13 = vector.shape_cast %12 : vector<1x16x16xf32> to vector<16x16xf32>
    %14 = vector.shape_cast %11 : vector<16x16xf32> to vector<1x16x16xf32>
    tpu.vector_store %arg4[%c0_11, %c0_12, %c0_13], %14 {strides = array<i32>} : memref<3x16x16xf32, #tpu.memory_space<vmem>>, vector<1x16x16xf32>,
    %c1 = arith.constant 1 : index
    %c0_14 = arith.constant 0 : index
    %c0_15 = arith.constant 0 : index
    %15 = vector.load %arg4[%c1, %c0_14, %c0_15] : memref<3x16x16xf32, #tpu.memory_space<vmem>>, vector<1x16x16xf32>
    %16 = vector.shape_cast %15 : vector<1x16x16xf32> to vector<16x16xf32>
    %cst_16 = arith.constant dense<0.000000e+00> : vector<16x16xf32>
    %17 = vector.multi_reduction <add>, %4, %cst_16 [0] : vector<2x16x16xf32> to vector<16x16xf32>
    %18 = arith.addf %16, %17 : vector<16x16xf32>
    %c1_17 = arith.constant 1 : index
    %c0_18 = arith.constant 0 : index
    %c0_19 = arith.constant 0 : index
    %19 = vector.load %arg4[%c1_17, %c0_18, %c0_19] : memref<3x16x16xf32, #tpu.memory_space<vmem>>, vector<1x16x16xf32>
    %20 = vector.shape_cast %19 : vector<1x16x16xf32> to vector<16x16xf32>
    %21 = vector.shape_cast %18 : vector<16x16xf32> to vector<1x16x16xf32>
    tpu.vector_store %arg4[%c1_17, %c0_18, %c0_19], %21 {strides = array<i32>} : memref<3x16x16xf32, #tpu.memory_space<vmem>>, vector<1x16x16xf32>,
    %c2 = arith.constant 2 : index
    %c0_20 = arith.constant 0 : index
    %c0_21 = arith.constant 0 : index
    %22 = vector.load %arg4[%c2, %c0_20, %c0_21] : memref<3x16x16xf32, #tpu.memory_space<vmem>>, vector<1x16x16xf32>
    %23 = vector.shape_cast %22 : vector<1x16x16xf32> to vector<16x16xf32>
    %cst_22 = arith.constant dense<0.000000e+00> : vector<16x16xf32>
    %24 = vector.multi_reduction <add>, %6, %cst_22 [0] : vector<2x16x16xf32> to vector<16x16xf32>
    %25 = arith.addf %23, %24 : vector<16x16xf32>
    %c2_23 = arith.constant 2 : index
    %c0_24 = arith.constant 0 : index
    %c0_25 = arith.constant 0 : index
    %26 = vector.load %arg4[%c2_23, %c0_24, %c0_25] : memref<3x16x16xf32, #tpu.memory_space<vmem>>, vector<1x16x16xf32>
    %27 = vector.shape_cast %26 : vector<1x16x16xf32> to vector<16x16xf32>
    %28 = vector.shape_cast %25 : vector<16x16xf32> to vector<1x16x16xf32>
    tpu.vector_store %arg4[%c2_23, %c0_24, %c0_25], %28 {strides = array<i32>} : memref<3x16x16xf32, #tpu.memory_space<vmem>>, vector<1x16x16xf32>,
    %c0_i32_26 = arith.constant 0 : i32
    %29 = arith.cmpi eq, %arg0, %c0_i32_26 : i32
    %30 = arith.extui %29 : i1 to i32
    %c0_i32_27 = arith.constant 0 : i32
    %31 = arith.cmpi ne, %30, %c0_i32_27 : i32
    scf.if %31 {
      %c0_28 = arith.constant 0 : index
      %c0_29 = arith.constant 0 : index
      %c0_30 = arith.constant 0 : index
      %32 = vector.load %arg4[%c0_28, %c0_29, %c0_30] : memref<3x16x16xf32, #tpu.memory_space<vmem>>, vector<1x16x16xf32>
      %33 = vector.shape_cast %32 : vector<1x16x16xf32> to vector<16x16xf32>
      %34 = vector.shape_cast %33 : vector<16x16xf32> to vector<1x16x16xf32>
      %cst_31 = arith.constant dense<0.000000e+00> : vector<1xf32>
      %35 = vector.multi_reduction <add>, %34, %cst_31 [1, 2] : vector<1x16x16xf32> to vector<1xf32>
      %36 = vector.shape_cast %35 : vector<1xf32> to vector<1x1x1xf32>
      %37 = vector.extract %36[0, 0, 0] : f32 from vector<1x1x1xf32>
      %c0_32 = arith.constant 0 : index
      %38 = memref.load %arg3[%c0_32] : memref<3xf32, #tpu.memory_space<smem>>
      memref.store %37, %arg3[%c0_32] : memref<3xf32, #tpu.memory_space<smem>>
      %c1_33 = arith.constant 1 : index
      %c0_34 = arith.constant 0 : index
      %c0_35 = arith.constant 0 : index
      %39 = vector.load %arg4[%c1_33, %c0_34, %c0_35] : memref<3x16x16xf32, #tpu.memory_space<vmem>>, vector<1x16x16xf32>
      %40 = vector.shape_cast %39 : vector<1x16x16xf32> to vector<16x16xf32>
      %41 = vector.shape_cast %40 : vector<16x16xf32> to vector<1x16x16xf32>
      %cst_36 = arith.constant dense<0.000000e+00> : vector<1xf32>
      %42 = vector.multi_reduction <add>, %41, %cst_36 [1, 2] : vector<1x16x16xf32> to vector<1xf32>
      %43 = vector.shape_cast %42 : vector<1xf32> to vector<1x1x1xf32>
      %44 = vector.extract %43[0, 0, 0] : f32 from vector<1x1x1xf32>
      %c1_37 = arith.constant 1 : index
      %45 = memref.load %arg3[%c1_37] : memref<3xf32, #tpu.memory_space<smem>>
      memref.store %44, %arg3[%c1_37] : memref<3xf32, #tpu.memory_space<smem>>
      %c2_38 = arith.constant 2 : index
      %c0_39 = arith.constant 0 : index
      %c0_40 = arith.constant 0 : index
      %46 = vector.load %arg4[%c2_38, %c0_39, %c0_40] : memref<3x16x16xf32, #tpu.memory_space<vmem>>, vector<1x16x16xf32>
      %47 = vector.shape_cast %46 : vector<1x16x16xf32> to vector<16x16xf32>
      %48 = vector.shape_cast %47 : vector<16x16xf32> to vector<1x16x16xf32>
      %cst_41 = arith.constant dense<0.000000e+00> : vector<1xf32>
      %49 = vector.multi_reduction <add>, %48, %cst_41 [1, 2] : vector<1x16x16xf32> to vector<1xf32>
      %50 = vector.shape_cast %49 : vector<1xf32> to vector<1x1x1xf32>
      %51 = vector.extract %50[0, 0, 0] : f32 from vector<1x1x1xf32>
      %c2_42 = arith.constant 2 : index
      %52 = memref.load %arg3[%c2_42] : memref<3xf32, #tpu.memory_space<smem>>
      memref.store %51, %arg3[%c2_42] : memref<3xf32, #tpu.memory_space<smem>>
    } else {
    }
    return
  }
  func.func @transform_0(%arg0: i32) -> (i32, i32, i32, i32) {
    %c0_i32 = arith.constant 0 : i32
    %c0_i32_0 = arith.constant 0 : i32
    %c0_i32_1 = arith.constant 0 : i32
    %c0_i32_2 = arith.constant 0 : i32
    return %arg0, %c0_i32, %c0_i32_0, %c0_i32_1 : i32, i32, i32, i32
  }
  func.func @transform_1(%arg0: i32) -> (i32, i32, i32, i32) {
    %c0_i32 = arith.constant 0 : i32
    %c0_i32_0 = arith.constant 0 : i32
    %c0_i32_1 = arith.constant 0 : i32
    %c0_i32_2 = arith.constant 0 : i32
    return %arg0, %c0_i32, %c0_i32_0, %c0_i32_1 : i32, i32, i32, i32
  }
  func.func @transform_2(%arg0: i32) -> i32 {
    %c0_i32 = arith.constant 0 : i32
    %c0_i32_0 = arith.constant 0 : i32
    return %c0_i32 : i32
  }
}

</mosaic_0001>

<llo_original>
// kernel: tpu_custom_call.1
$region0: #{tpu_custom_call.1}
  #allocation0 [shape = 'u32[]', space=smem, size = 0x4, offset = 0x4, fixed_abs, tag = 'smem constant byte address 0x4 - core index']
  #allocation1 [shape = 'u32[144,128]{1,0:T(1,128)}', space=vmem, size = 0x12000, scoped, tag = 'internal scratch']
  #allocation2 [shape = 'f32[3,16,16]{2,1,0:T(8,128)}', space=vmem, size = 0x6000, scoped, tag = 'scratch operand']
  #allocation9 [shape = 's32[]', space=sflag, size = 0x4, offset = 0, fixed_abs, tag = 'sflag constant byte address 0x0 - dummy sync flag']
  #allocation11 [shape = 's32[]', space=sflag, size = 0x4, offset = 0, fixed_abs, tag = 'sflag constant byte address 0x0 - dummy sync flag']
  %s0 = inlined_call_operand.hbm [shape: f32[2,4,16,16], index: 0, kind: input, shape index: {}]
  %s1 = inlined_call_operand.hbm [shape: f32[2,4,16,16], index: 1, kind: input, shape index: {}]
  %s2 = inlined_call_operand.hbm [shape: f32[3], index: 2, kind: output, shape index: {}]
  %s3 = sld [smem:[#allocation0]]
  $region34: #{tpu_custom_call.1} parent=0
    _
  %s5 = ssub.s32 1, %s3
  %s6 = scalar_select 0, %s5, %s3
  $region1: #{tpu_custom_call.1} parent=0
    #allocation3 [shape = 'u8[16384]{0}', space=vmem, size = 0x4000, scoped, tag = 'input window, operand 0, single buffered']
    #allocation4 [shape = 's32[1]{0}', space=sflag, size = 0x4, scoped, tag = 'scoped memory for tpu_custom_call.1']
    #allocation5 [shape = 's32[1]{0}', space=sflag, size = 0x4, scoped, tag = 'scoped memory for tpu_custom_call.1']
    #allocation6 [shape = 'u8[16384]{0}', space=vmem, size = 0x4000, scoped, tag = 'input window, operand 1, single buffered']
    #allocation7 [shape = 's32[1]{0}', space=sflag, size = 0x4, scoped, tag = 'scoped memory for tpu_custom_call.1']
    #allocation8 [shape = 'u8[512]{0}', space=smem, size = 0x200, scoped, tag = 'output window, operand 0, single buffered']
    %7 = vsyncpa [#allocation4], 0
    %8 = vsyncpa [#allocation7], 0
    %9 = vsyncpa [#allocation5], 0
    // Predicated region
    $region2: #{tpu_custom_call.1} parent=1 // pred_check
      _
    $region3: #{tpu_custom_call.1} parent=1 // pred_check_branch
      %11 = sbr.rel (0) target = $region5
    $region4: #{tpu_custom_call.1} parent=1 // pred_region
      #allocation10 [shape = 'u32[6]{0}', space=smem, size = 0x18, scoped, tag = 'DMA stride descriptor']
      %s13 = ssub.s32 512, 512
      %14 = vsyncadd [#allocation4], %s13
      %s16 = sshll.u32 1, 14
      %s17 = sxor.u32 4294967295, %s16
      %s19 = sld [smem:[#allocation0]]
      %s20 = sadd.s32 2, %s19
      %s22 = sshll.u32 7, 26
      %s23 = sxor.u32 4294967295, %s22
      %s24 = sand.u32 0, %s23
      %s25 = sshll.u32 %s20, 26
      %s26 = sor.u32 %s24, %s25
      %s27 = sshll.u32 [#allocation3], 4
      %s28 = int_to_ptr.vmem [resolvable:$true] %s27
      %34 = sst [smem:[#allocation10]] 1024
      %s35 = scalar_lea.smem [#allocation10], 1
      %36 = sst [smem:[%s35]] 256
      %s37 = scalar_lea.smem [#allocation10], 2
      %38 = sst [smem:[%s37]] 2
      %s39 = scalar_lea.smem [#allocation10], 3
      %40 = sst [smem:[%s39]] 128
      %s41 = scalar_lea.smem [#allocation10], 4
      %42 = sst [smem:[%s41]] 128
      %s43 = scalar_lea.smem [#allocation10], 5
      %44 = sst [smem:[%s43]] 8
      %46 = dma.general %s0, 512, %s28, [#allocation4], [#allocation9], [#allocation10], %s26, 0
    $region5: #{tpu_custom_call.1} parent=1 // pred_fallthru
      _
    // Predicated region
    $region6: #{tpu_custom_call.1} parent=1 // pred_check
      _
    $region7: #{tpu_custom_call.1} parent=1 // pred_check_branch
      %48 = sbr.rel (0) target = $region9
    $region8: #{tpu_custom_call.1} parent=1 // pred_region
      #allocation12 [shape = 'u32[6]{0}', space=smem, size = 0x18, scoped, tag = 'DMA stride descriptor']
      %s50 = ssub.s32 512, 512
      %51 = vsyncadd [#allocation7], %s50
      %s53 = sshll.u32 1, 14
      %s54 = sxor.u32 4294967295, %s53
      %s56 = sld [smem:[#allocation0]]
      %s57 = sadd.s32 2, %s56
      %s59 = sshll.u32 7, 26
      %s60 = sxor.u32 4294967295, %s59
      %s61 = sand.u32 0, %s60
      %s62 = sshll.u32 %s57, 26
      %s63 = sor.u32 %s61, %s62
      %s64 = sshll.u32 [#allocation6], 4
      %s65 = int_to_ptr.vmem [resolvable:$true] %s64
      %71 = sst [smem:[#allocation12]] 1024
      %s72 = scalar_lea.smem [#allocation12], 1
      %73 = sst [smem:[%s72]] 256
      %s74 = scalar_lea.smem [#allocation12], 2
      %75 = sst [smem:[%s74]] 2
      %s76 = scalar_lea.smem [#allocation12], 3
      %77 = sst [smem:[%s76]] 128
      %s78 = scalar_lea.smem [#allocation12], 4
      %79 = sst [smem:[%s78]] 128
      %s80 = scalar_lea.smem [#allocation12], 5
      %81 = sst [smem:[%s80]] 8
      %83 = dma.general %s1, 512, %s65, [#allocation7], [#allocation11], [#allocation12], %s63, 0
    $region9: #{tpu_custom_call.1} parent=1 // pred_fallthru
      _
    // Predicated region
    $region10: #{tpu_custom_call.1} parent=1 // pred_check
      _
    $region11: #{tpu_custom_call.1} parent=1 // pred_check_branch
      %85 = sbr.rel (0) target = $region13
    $region12: #{tpu_custom_call.1} parent=1 // pred_region
      %86 = dma.done [#allocation4], 512
    $region13: #{tpu_custom_call.1} parent=1 // pred_fallthru
      _
    // Predicated region
    $region14: #{tpu_custom_call.1} parent=1 // pred_check
      _
    $region15: #{tpu_custom_call.1} parent=1 // pred_check_branch
      %88 = sbr.rel (0) target = $region17
    $region16: #{tpu_custom_call.1} parent=1 // pred_region
      %89 = dma.done [#allocation7], 512
    $region17: #{tpu_custom_call.1} parent=1 // pred_fallthru
      _
    %p90 = scmp.eq.s32.totalorder 0, 0
    // Predicated region
    $region18: #{tpu_custom_call.1} parent=1 // pred_check
      %p91 = pneg %p90
    $region19: #{tpu_custom_call.1} parent=1 // pred_check_branch
      %93 = sbr.rel (%p91) target = $region21
    $region20: #{tpu_custom_call.1} parent=1 // pred_region
      %vm94 = vcmask 130048
      %95 = vst.msk [vmem:[#allocation2] sm:$0xff] %vm94, 0.0
      %96 = vst.msk [vmem:[#allocation2 + $0x8] sm:$0xff] %vm94, 0.0
      %97 = vst.msk [vmem:[#allocation2 + $0x10] sm:$0xff] %vm94, 0.0
      %98 = vst.msk [vmem:[#allocation2 + $0x18] sm:$0xff] %vm94, 0.0
      %99 = vst.msk [vmem:[#allocation2 + $0x20] sm:$0xff] %vm94, 0.0
      %100 = vst.msk [vmem:[#allocation2 + $0x28] sm:$0xff] %vm94, 0.0
    $region21: #{tpu_custom_call.1} parent=1 // pred_fallthru
      _
    %v101 = vld [vmem:[#allocation3] sm:$0xff]
    %v102 = vld [vmem:[#allocation3 + $0x8] sm:$0xff]
    %v103 = vld [vmem:[#allocation3 + $0x10] sm:$0xff]
    %v104 = vld [vmem:[#allocation3 + $0x18] sm:$0xff]
    %v105 = vld [vmem:[#allocation6] sm:$0xff]
    %v106 = vld [vmem:[#allocation6 + $0x8] sm:$0xff]
    %v107 = vld [vmem:[#allocation6 + $0x10] sm:$0xff]
    %v108 = vld [vmem:[#allocation6 + $0x18] sm:$0xff]
    %v109 = vld [vmem:[#allocation2] sm:$0xff]
    %v110 = vld [vmem:[#allocation2 + $0x8] sm:$0xff]
    %v111 = vmul.f32 %v101, %v105
    %v112 = vmul.f32 %v102, %v106
    %v113 = vmul.f32 %v103, %v107
    %v114 = vmul.f32 %v104, %v108
    %vm115 = vcmask 130048
    %v116 = vsel %vm115, %v111, 0.0
    %v117 = vsel %vm115, %v113, 0.0
    %v118 = vadd.f32 %v116, %v117
    %v119 = vsel %vm115, %v112, 0.0
    %v120 = vsel %vm115, %v114, 0.0
    %v121 = vadd.f32 %v119, %v120
    %v122 = vadd.f32 %v109, %v118
    %v123 = vadd.f32 %v110, %v121
    %124 = vst.msk [vmem:[#allocation2] sm:$0xff] %vm115, %v122
    %125 = vst.msk [vmem:[#allocation2 + $0x8] sm:$0xff] %vm115, %v123
    %s126 = scalar_lea.vmem [#allocation2], 16
    %v127 = vld [vmem:[%s126] sm:$0xff]
    %v128 = vld [vmem:[%s126 + $0x8] sm:$0xff]
    %v129 = vsel %vm115, %v101, 0.0
    %v130 = vsel %vm115, %v103, 0.0
    %v131 = vadd.f32 %v129, %v130
    %v132 = vsel %vm115, %v102, 0.0
    %v133 = vsel %vm115, %v104, 0.0
    %v134 = vadd.f32 %v132, %v133
    %v135 = vadd.f32 %v127, %v131
    %v136 = vadd.f32 %v128, %v134
    %137 = vst.msk [vmem:[%s126] sm:$0xff] %vm115, %v135
    %138 = vst.msk [vmem:[%s126 + $0x8] sm:$0xff] %vm115, %v136
    %s139 = scalar_lea.vmem [#allocation2], 32
    %v140 = vld [vmem:[%s139] sm:$0xff]
    %v141 = vld [vmem:[%s139 + $0x8] sm:$0xff]
    %v142 = vsel %vm115, %v105, 0.0
    %v143 = vsel %vm115, %v107, 0.0
    %v144 = vadd.f32 %v142, %v143
    %v145 = vsel %vm115, %v106, 0.0
    %v146 = vsel %vm115, %v108, 0.0
    %v147 = vadd.f32 %v145, %v146
    %v148 = vadd.f32 %v140, %v144
    %v149 = vadd.f32 %v141, %v147
    %150 = vst.msk [vmem:[%s139] sm:$0xff] %vm115, %v148
    %151 = vst.msk [vmem:[%s139 + $0x8] sm:$0xff] %vm115, %v149
    // Predicated region
    $region22: #{tpu_custom_call.1} parent=1 // pred_check
      %p152 = pneg %p90
    $region23: #{tpu_custom_call.1} parent=1 // pred_check_branch
      %154 = sbr.rel (%p152) target = $region25
    $region24: #{tpu_custom_call.1} parent=1 // pred_region
      %v155 = vld [vmem:[#allocation2] sm:$0xff]
      %v156 = vld [vmem:[#allocation2 + $0x8] sm:$0xff]
      %v157 = vsel %vm115, %v155, 0.0
      %v158 = vsel %vm115, %v156, 0.0
      %v159 = vadd.f32 %v157, %v158
      %160 = vadd.xlane.f32.xlu0 %v159
      %v161 = vpop.xlane.xlu0 %160
      %v162 = vrot.slane %v161, 4
      %v163 = vadd.f32 %v161, %v162
      %v164 = vrot.slane %v163, 2
      %v165 = vadd.f32 %v163, %v164
      %v166 = vrot.slane %v165, 1
      %v167 = vadd.f32 %v165, %v166
      %s168 = vtos %v167
      %s169 = scalar_lea.smem [#allocation8], 0
      %170 = sst [smem:[%s169]] %s168
      %v171 = vld [vmem:[%s126] sm:$0xff]
      %v172 = vld [vmem:[%s126 + $0x8] sm:$0xff]
      %v173 = vsel %vm115, %v171, 0.0
      %v174 = vsel %vm115, %v172, 0.0
      %v175 = vadd.f32 %v173, %v174
      %176 = vadd.xlane.f32.xlu0 %v175
      %v177 = vpop.xlane.xlu0 %176
      %v178 = vrot.slane %v177, 4
      %v179 = vadd.f32 %v177, %v178
      %v180 = vrot.slane %v179, 2
      %v181 = vadd.f32 %v179, %v180
      %v182 = vrot.slane %v181, 1
      %v183 = vadd.f32 %v181, %v182
      %s184 = vtos %v183
      %s185 = scalar_lea.smem [#allocation8], 1
      %186 = sst [smem:[%s185]] %s184
      %v187 = vld [vmem:[%s139] sm:$0xff]
      %v188 = vld [vmem:[%s139 + $0x8] sm:$0xff]
      %v189 = vsel %vm115, %v187, 0.0
      %v190 = vsel %vm115, %v188, 0.0
      %v191 = vadd.f32 %v189, %v190
      %192 = vadd.xlane.f32.xlu0 %v191
      %v193 = vpop.xlane.xlu0 %192
      %v194 = vrot.slane %v193, 4
      %v195 = vadd.f32 %v193, %v194
      %v196 = vrot.slane %v195, 2
      %v197 = vadd.f32 %v195, %v196
      %v198 = vrot.slane %v197, 1
      %v199 = vadd.f32 %v197, %v198
      %s200 = vtos %v199
      %s201 = scalar_lea.smem [#allocation8], 2
      %202 = sst [smem:[%s201]] %s200
    $region25: #{tpu_custom_call.1} parent=1 // pred_fallthru
      _
    // Predicated region
    $region26: #{tpu_custom_call.1} parent=1 // pred_check
      _
    $region27: #{tpu_custom_call.1} parent=1 // pred_check_branch
      %204 = sbr.rel (0) target = $region29
    $region28: #{tpu_custom_call.1} parent=1 // pred_region
      %s206 = ssub.s32 16, 16
      %207 = vsyncadd [#allocation5], %s206
      %210 = dma.smem_to_hbm [#allocation8], 16, %s2, [#allocation5]
    $region29: #{tpu_custom_call.1} parent=1 // pred_fallthru
      _
    // Predicated region
    $region30: #{tpu_custom_call.1} parent=1 // pred_check
      _
    $region31: #{tpu_custom_call.1} parent=1 // pred_check_branch
      %212 = sbr.rel (0) target = $region33
    $region32: #{tpu_custom_call.1} parent=1 // pred_region
      %213 = dma.done [#allocation5], 16
    $region33: #{tpu_custom_call.1} parent=1 // pred_fallthru
      _
    %214 = sfence
    %215 = vsyncpa [#allocation4], 1
    %216 = vsyncpa [#allocation7], 1
    %217 = vsyncpa [#allocation5], 1

</llo_original>
